<compile_context>
chip_gen: v6e
topology: v6e:2x2x1
jax: 0.10.0
libtpu: 0.0.40
codegen_flags: <defaults>
</compile_context>

<pallas_src>
import functools
import math

import jax
import jax.numpy as jnp
from jax.experimental import pallas as pl
from jax.experimental.pallas import tpu as pltpu

_LANE = 128
_SUBLANE = 8
_INV_SQRT2 = 1.0 / math.sqrt(2.0)


def _round_up(x, m):
    return (x + m - 1) // m * m


def _padded_vmem_bytes(shape, dtype):
    """Bytes an array occupies in VMEM after (sublane, lane) tiling/padding."""
    itemsize = jnp.dtype(dtype).itemsize
    if len(shape) == 1:
        rows, cols = 1, shape[0]
        lead = 1
    else:
        rows, cols = shape[-2], shape[-1]
        lead = 1
        for s in shape[:-2]:
            lead *= s
    sub = _SUBLANE * max(1, 4 // itemsize)  # packed dtypes pack along sublanes
    return lead * _round_up(rows, sub) * _round_up(cols, _LANE) * itemsize


# ----------------------------------------------------------------------------
# Fused kernel.  refs = (x, packed_params, w_0, ..., w_{n-1}, out).
# layer_cfgs[i] = (apply_norm, apply_act, gamma_off, beta_or_bias_off, dout)
# with static Python-int offsets into the packed (1, P) params ref.
# ----------------------------------------------------------------------------
def _mlp_fused_kernel(*refs, layer_cfgs, eps, matmul_dtype):
    x_ref, p_ref = refs[0], refs[1]
    o_ref = refs[-1]
    w_refs = refs[2:-1]

    cast_lhs = jnp.dtype(matmul_dtype) != jnp.dtype(jnp.float32)
    y = x_ref[...].astype(jnp.float32)

    for i, (apply_norm, apply_act, off_g, off_b, dout) in enumerate(layer_cfgs):
        w = w_refs[i][...]
        lhs = y.astype(matmul_dtype) if cast_lhs else y
        # MXU matmul with f32 accumulation.
        y = jnp.dot(lhs, w, preferred_element_type=jnp.float32)

        if apply_norm:
            gamma = p_ref[:, off_g:off_g + dout]
            beta = p_ref[:, off_b:off_b + dout]
            # Two-pass batch statistics (training-mode BatchNorm1d, biased
            # variance) -- numerically stable; gamma*rsqrt folded into one FMA.
            mean = jnp.mean(y, axis=0, keepdims=True)
            centered = y - mean
            var = jnp.mean(centered * centered, axis=0, keepdims=True)
            scale = gamma * jax.lax.rsqrt(var + eps)
            y = centered * scale + beta
        else:
            bias = p_ref[:, off_b:off_b + dout]
            y = y + bias

        if apply_act:
            # Exact GELU (erf form), matching nn.GELU default, in f32.
            # TODO(synk): at compute-bound sizes on v6e/v7x move GELU to the
            # tanh form (EUP slot) or bf16 VALU to keep the MXU critical.
            y = 0.5 * y * (1.0 + jax.lax.erf(y * _INV_SQRT2))

    o_ref[...] = y.astype(o_ref.dtype)


def mlp_forward(x, params, *, final_norm=True, final_act=True, eps=1e-5,
                matmul_dtype=jnp.float32):
    """Run the full MLP as a single fused, grid-less Pallas call.

    params: list of (w, b, gamma, beta) with w: (Din, Dout), others: (1, Dout).
    matmul_dtype: jnp.float32 (exact) or jnp.bfloat16 (half weight HBM traffic
    and native bf16 MXU datapath on v5e/v6e/v7x; BN/GELU epilogue stays f32).
    """
    n = len(params)
    B = x.shape[0]
    d_out = params[-1][0].shape[1]

    layer_cfgs = []
    packed_segments = []
    packed_len = 0
    weights = []

    def _push(vec):
        nonlocal packed_len
        d = vec.shape[-1]
        pad = _round_up(d, _LANE)
        seg = jnp.zeros((1, pad), jnp.float32)
        seg = seg.at[:, :d].set(vec.reshape(1, d).astype(jnp.float32))
        packed_segments.append(seg)
        off = packed_len
        packed_len += pad
        return off

    for i, (w, b, g, beta) in enumerate(params):
        is_last = (i == n - 1)
        apply_norm = True if not is_last else final_norm
        apply_act = True if not is_last else final_act
        dout = w.shape[1]
        weights.append(w.astype(matmul_dtype))
        if apply_norm:
            # Linear bias is a mathematical no-op under BN mean subtraction.
            off_g = _push(g)
            off_b = _push(beta)
        else:
            off_g = -1
            off_b = _push(b)
        layer_cfgs.append((apply_norm, apply_act, off_g, off_b, dout))

    packed = jnp.concatenate(packed_segments, axis=1)  # (1, packed_len)

    # ---- VMEM budget from the actual footprint (not a blanket constant) ----
    max_width = max(max(w.shape[1] for w, _, _, _ in params), x.shape[1])
    footprint = (
        _padded_vmem_bytes(x.shape, jnp.float32)
        + _padded_vmem_bytes(packed.shape, jnp.float32)
        + sum(_padded_vmem_bytes(w.shape, matmul_dtype) for w in weights)
        + _padded_vmem_bytes((B, d_out), jnp.float32)
        + 2 * _padded_vmem_bytes((B, max_width), jnp.float32)  # live activations
    )
    # Escape hatch well below the v7x 64-MiB physical VMEM.
    if footprint > 40 * 1024 * 1024:
        raise ValueError(
            f"Fully-fused MLP footprint {footprint/2**20:.1f} MiB exceeds the "
            "grid-less VMEM budget; tile the widest layer with a grid instead.")
    vmem_limit = max(16 * 1024 * 1024, int(footprint * 1.5) + (1 << 20))

    flat_inputs = [x, packed] + weights
    in_specs = [pl.BlockSpec(a.shape, lambda: (0, 0)) for a in flat_inputs]

    kernel = functools.partial(
        _mlp_fused_kernel,
        layer_cfgs=tuple(layer_cfgs),
        eps=eps,
        matmul_dtype=matmul_dtype,
    )

    return pl.pallas_call(
        kernel,
        out_shape=jax.ShapeDtypeStruct((B, d_out), jnp.float32),
        in_specs=in_specs,
        out_specs=pl.BlockSpec((B, d_out), lambda: (0, 0)),
        compiler_params=pltpu.CompilerParams(vmem_limit_bytes=vmem_limit),
    )(*flat_inputs)


# ----------------------------------------------------------------------------
# Pure-JAX reference (mirrors the PyTorch module) for correctness checking.
# ----------------------------------------------------------------------------
def mlp_reference(x, params, *, final_norm=True, final_act=True, eps=1e-5):
    n = len(params)
    for i, (w, b, g, beta) in enumerate(params):
        is_last = (i == n - 1)
        y = x @ w + b
        if (not is_last) or final_norm:
            mean = jnp.mean(y, axis=0, keepdims=True)
            var = jnp.mean((y - mean) ** 2, axis=0, keepdims=True)
            y = (y - mean) * jax.lax.rsqrt(var + eps) * g + beta
        if (not is_last) or final_act:
            y = 0.5 * y * (1.0 + jax.lax.erf(y / math.sqrt(2.0)))
        x = y
    return x


def init_mlp_params(key, in_dim, out_dim, hidden_dim):
    """PyTorch-like init: Linear W, b ~ U(+-1/sqrt(fan_in)); BN gamma=1, beta=0."""
    dims = [in_dim] + list(hidden_dim) + [out_dim]
    params = []
    for i in range(len(dims) - 1):
        fan_in, fan_out = dims[i], dims[i + 1]
        key, kw, kb = jax.random.split(key, 3)
        bound = 1.0 / math.sqrt(fan_in)
        w = jax.random.uniform(kw, (fan_in, fan_out), jnp.float32, -bound, bound)
        b = jax.random.uniform(kb, (1, fan_out), jnp.float32, -bound, bound)
        gamma = jnp.ones((1, fan_out), jnp.float32)
        beta = jnp.zeros((1, fan_out), jnp.float32)
        params.append((w, b, gamma, beta))
    return params


if __name__ == "__main__":
    # Small shapes consistent with the module: x is (batch, in_dim) for
    # BatchNorm1d; batch > 1 is required for training-mode batch statistics.
    batch = 8
    in_dim = 64
    out_dim = 32
    hidden_dim = [128, 256, 256, 128]

    key = jax.random.PRNGKey(0)
    key, kx = jax.random.split(key)
    x = jax.random.normal(kx, (batch, in_dim), jnp.float32)
    params = init_mlp_params(key, in_dim, out_dim, hidden_dim)

    ref = jax.block_until_ready(
        mlp_reference(x, params, final_norm=True, final_act=True))

    # Exact f32 path.
    out = jax.block_until_ready(
        mlp_forward(x, params, final_norm=True, final_act=True))
    assert out.shape == (batch, out_dim), out.shape
    assert bool(jnp.all(jnp.isfinite(out)))
    err = float(jnp.max(jnp.abs(out - ref)))
    assert err < 1e-3, f"f32 path max abs error vs reference: {err}"

    # bf16-weight MXU path (v5e/v6e/v7x native datapath), looser tolerance.
    out_bf16 = jax.block_until_ready(
        mlp_forward(x, params, final_norm=True, final_act=True,
                    matmul_dtype=jnp.bfloat16))
    assert bool(jnp.all(jnp.isfinite(out_bf16)))
    err_bf16 = float(jnp.max(jnp.abs(out_bf16 - ref)))
    assert err_bf16 < 1e-1, f"bf16 path max abs error vs reference: {err_bf16}"

    print("KERNEL_OK")
</pallas_src>

<mosaic_0001>
module attributes {stable_mosaic.version = 11 : i64} {
  func.func @_mlp_fused_kernel(%arg0: memref<8x64xf32, #tpu.memory_space<vmem>>, %arg1: memref<1x1792xf32, #tpu.memory_space<vmem>>, %arg2: memref<64x128xf32, #tpu.memory_space<vmem>>, %arg3: memref<128x256xf32, #tpu.memory_space<vmem>>, %arg4: memref<256x256xf32, #tpu.memory_space<vmem>>, %arg5: memref<256x128xf32, #tpu.memory_space<vmem>>, %arg6: memref<128x32xf32, #tpu.memory_space<vmem>>, %arg7: memref<8x32xf32, #tpu.memory_space<vmem>>) attributes {dimension_semantics = [], scalar_prefetch = 0 : i64, scratch_operands = 0 : i64, tpu.core_type = #tpu.core_type<tc>} {
    %c0 = arith.constant 0 : index
    %c0_0 = arith.constant 0 : index
    %0 = vector.load %arg0[%c0, %c0_0] : memref<8x64xf32, #tpu.memory_space<vmem>>, vector<8x64xf32>
    %c0_1 = arith.constant 0 : index
    %c0_2 = arith.constant 0 : index
    %1 = vector.load %arg2[%c0_1, %c0_2] : memref<64x128xf32, #tpu.memory_space<vmem>>, vector<64x128xf32>
    %cst = arith.constant dense<0.000000e+00> : vector<8x128xf32>
    %2 = tpu.matmul %0, %1, %cst {dimension_numbers = #tpu.dot_dimension_numbers<[1], [0], [0], [1], [0, 0, 1, 1], [], []>} : vector<8x64xf32>, vector<64x128xf32>, vector<8x128xf32> -> vector<8x128xf32>
    %c0_3 = arith.constant 0 : index
    %c0_4 = arith.constant 0 : index
    %3 = vector.load %arg1[%c0_3, %c0_4] : memref<1x1792xf32, #tpu.memory_space<vmem>>, vector<1x128xf32>
    %c0_5 = arith.constant 0 : index
    %c128 = arith.constant 128 : index
    %4 = vector.load %arg1[%c0_5, %c128] : memref<1x1792xf32, #tpu.memory_space<vmem>>, vector<1x128xf32>
    %cst_6 = arith.constant dense<0.000000e+00> : vector<128xf32>
    %5 = vector.multi_reduction <add>, %2, %cst_6 [0] : vector<8x128xf32> to vector<128xf32>
    %6 = vector.shape_cast %5 : vector<128xf32> to vector<1x128xf32>
    %cst_7 = arith.constant 8.000000e+00 : f32
    %7 = vector.broadcast %cst_7 : f32 to vector<1x128xf32>
    %8 = arith.divf %6, %7 : vector<1x128xf32>
    %9 = vector.broadcast %8 : vector<1x128xf32> to vector<8x128xf32>
    %10 = arith.subf %2, %9 : vector<8x128xf32>
    %11 = arith.mulf %10, %10 : vector<8x128xf32>
    %cst_8 = arith.constant dense<0.000000e+00> : vector<128xf32>
    %12 = vector.multi_reduction <add>, %11, %cst_8 [0] : vector<8x128xf32> to vector<128xf32>
    %13 = vector.shape_cast %12 : vector<128xf32> to vector<1x128xf32>
    %cst_9 = arith.constant 8.000000e+00 : f32
    %14 = vector.broadcast %cst_9 : f32 to vector<1x128xf32>
    %15 = arith.divf %13, %14 : vector<1x128xf32>
    %cst_10 = arith.constant 9.99999974E-6 : f32
    %16 = vector.broadcast %cst_10 : f32 to vector<1x128xf32>
    %17 = arith.addf %15, %16 : vector<1x128xf32>
    %18 = math.rsqrt %17 : vector<1x128xf32>
    %19 = arith.mulf %3, %18 : vector<1x128xf32>
    %20 = vector.broadcast %19 : vector<1x128xf32> to vector<8x128xf32>
    %21 = arith.mulf %10, %20 : vector<8x128xf32>
    %22 = vector.broadcast %4 : vector<1x128xf32> to vector<8x128xf32>
    %23 = arith.addf %21, %22 : vector<8x128xf32>
    %cst_11 = arith.constant 5.000000e-01 : f32
    %24 = vector.broadcast %cst_11 : f32 to vector<8x128xf32>
    %25 = arith.mulf %24, %23 : vector<8x128xf32>
    %cst_12 = arith.constant 0.707106769 : f32
    %26 = vector.broadcast %cst_12 : f32 to vector<8x128xf32>
    %27 = arith.mulf %23, %26 : vector<8x128xf32>
    %28 = math.erf %27 : vector<8x128xf32>
    %cst_13 = arith.constant 1.000000e+00 : f32
    %29 = vector.broadcast %cst_13 : f32 to vector<8x128xf32>
    %30 = arith.addf %29, %28 : vector<8x128xf32>
    %31 = arith.mulf %25, %30 : vector<8x128xf32>
    %c0_14 = arith.constant 0 : index
    %c0_15 = arith.constant 0 : index
    %32 = vector.load %arg3[%c0_14, %c0_15] : memref<128x256xf32, #tpu.memory_space<vmem>>, vector<128x256xf32>
    %cst_16 = arith.constant dense<0.000000e+00> : vector<8x256xf32>
    %33 = tpu.matmul %31, %32, %cst_16 {dimension_numbers = #tpu.dot_dimension_numbers<[1], [0], [0], [1], [0, 0, 1, 1], [], []>} : vector<8x128xf32>, vector<128x256xf32>, vector<8x256xf32> -> vector<8x256xf32>
    %c0_17 = arith.constant 0 : index
    %c256 = arith.constant 256 : index
    %34 = vector.load %arg1[%c0_17, %c256] : memref<1x1792xf32, #tpu.memory_space<vmem>>, vector<1x256xf32>
    %c0_18 = arith.constant 0 : index
    %c512 = arith.constant 512 : index
    %35 = vector.load %arg1[%c0_18, %c512] : memref<1x1792xf32, #tpu.memory_space<vmem>>, vector<1x256xf32>
    %cst_19 = arith.constant dense<0.000000e+00> : vector<256xf32>
    %36 = vector.multi_reduction <add>, %33, %cst_19 [0] : vector<8x256xf32> to vector<256xf32>
    %37 = vector.shape_cast %36 : vector<256xf32> to vector<1x256xf32>
    %cst_20 = arith.constant 8.000000e+00 : f32
    %38 = vector.broadcast %cst_20 : f32 to vector<1x256xf32>
    %39 = arith.divf %37, %38 : vector<1x256xf32>
    %40 = vector.broadcast %39 : vector<1x256xf32> to vector<8x256xf32>
    %41 = arith.subf %33, %40 : vector<8x256xf32>
    %42 = arith.mulf %41, %41 : vector<8x256xf32>
    %cst_21 = arith.constant dense<0.000000e+00> : vector<256xf32>
    %43 = vector.multi_reduction <add>, %42, %cst_21 [0] : vector<8x256xf32> to vector<256xf32>
    %44 = vector.shape_cast %43 : vector<256xf32> to vector<1x256xf32>
    %cst_22 = arith.constant 8.000000e+00 : f32
    %45 = vector.broadcast %cst_22 : f32 to vector<1x256xf32>
    %46 = arith.divf %44, %45 : vector<1x256xf32>
    %cst_23 = arith.constant 9.99999974E-6 : f32
    %47 = vector.broadcast %cst_23 : f32 to vector<1x256xf32>
    %48 = arith.addf %46, %47 : vector<1x256xf32>
    %49 = math.rsqrt %48 : vector<1x256xf32>
    %50 = arith.mulf %34, %49 : vector<1x256xf32>
    %51 = vector.broadcast %50 : vector<1x256xf32> to vector<8x256xf32>
    %52 = arith.mulf %41, %51 : vector<8x256xf32>
    %53 = vector.broadcast %35 : vector<1x256xf32> to vector<8x256xf32>
    %54 = arith.addf %52, %53 : vector<8x256xf32>
    %cst_24 = arith.constant 5.000000e-01 : f32
    %55 = vector.broadcast %cst_24 : f32 to vector<8x256xf32>
    %56 = arith.mulf %55, %54 : vector<8x256xf32>
    %cst_25 = arith.constant 0.707106769 : f32
    %57 = vector.broadcast %cst_25 : f32 to vector<8x256xf32>
    %58 = arith.mulf %54, %57 : vector<8x256xf32>
    %59 = math.erf %58 : vector<8x256xf32>
    %cst_26 = arith.constant 1.000000e+00 : f32
    %60 = vector.broadcast %cst_26 : f32 to vector<8x256xf32>
    %61 = arith.addf %60, %59 : vector<8x256xf32>
    %62 = arith.mulf %56, %61 : vector<8x256xf32>
    %c0_27 = arith.constant 0 : index
    %c0_28 = arith.constant 0 : index
    %63 = vector.load %arg4[%c0_27, %c0_28] : memref<256x256xf32, #tpu.memory_space<vmem>>, vector<256x256xf32>
    %cst_29 = arith.constant dense<0.000000e+00> : vector<8x256xf32>
    %64 = tpu.matmul %62, %63, %cst_29 {dimension_numbers = #tpu.dot_dimension_numbers<[1], [0], [0], [1], [0, 0, 1, 1], [], []>} : vector<8x256xf32>, vector<256x256xf32>, vector<8x256xf32> -> vector<8x256xf32>
    %c0_30 = arith.constant 0 : index
    %c768 = arith.constant 768 : index
    %65 = vector.load %arg1[%c0_30, %c768] : memref<1x1792xf32, #tpu.memory_space<vmem>>, vector<1x256xf32>
    %c0_31 = arith.constant 0 : index
    %c1024 = arith.constant 1024 : index
    %66 = vector.load %arg1[%c0_31, %c1024] : memref<1x1792xf32, #tpu.memory_space<vmem>>, vector<1x256xf32>
    %cst_32 = arith.constant dense<0.000000e+00> : vector<256xf32>
    %67 = vector.multi_reduction <add>, %64, %cst_32 [0] : vector<8x256xf32> to vector<256xf32>
    %68 = vector.shape_cast %67 : vector<256xf32> to vector<1x256xf32>
    %cst_33 = arith.constant 8.000000e+00 : f32
    %69 = vector.broadcast %cst_33 : f32 to vector<1x256xf32>
    %70 = arith.divf %68, %69 : vector<1x256xf32>
    %71 = vector.broadcast %70 : vector<1x256xf32> to vector<8x256xf32>
    %72 = arith.subf %64, %71 : vector<8x256xf32>
    %73 = arith.mulf %72, %72 : vector<8x256xf32>
    %cst_34 = arith.constant dense<0.000000e+00> : vector<256xf32>
    %74 = vector.multi_reduction <add>, %73, %cst_34 [0] : vector<8x256xf32> to vector<256xf32>
    %75 = vector.shape_cast %74 : vector<256xf32> to vector<1x256xf32>
    %cst_35 = arith.constant 8.000000e+00 : f32
    %76 = vector.broadcast %cst_35 : f32 to vector<1x256xf32>
    %77 = arith.divf %75, %76 : vector<1x256xf32>
    %cst_36 = arith.constant 9.99999974E-6 : f32
    %78 = vector.broadcast %cst_36 : f32 to vector<1x256xf32>
    %79 = arith.addf %77, %78 : vector<1x256xf32>
    %80 = math.rsqrt %79 : vector<1x256xf32>
    %81 = arith.mulf %65, %80 : vector<1x256xf32>
    %82 = vector.broadcast %81 : vector<1x256xf32> to vector<8x256xf32>
    %83 = arith.mulf %72, %82 : vector<8x256xf32>
    %84 = vector.broadcast %66 : vector<1x256xf32> to vector<8x256xf32>
    %85 = arith.addf %83, %84 : vector<8x256xf32>
    %cst_37 = arith.constant 5.000000e-01 : f32
    %86 = vector.broadcast %cst_37 : f32 to vector<8x256xf32>
    %87 = arith.mulf %86, %85 : vector<8x256xf32>
    %cst_38 = arith.constant 0.707106769 : f32
    %88 = vector.broadcast %cst_38 : f32 to vector<8x256xf32>
    %89 = arith.mulf %85, %88 : vector<8x256xf32>
    %90 = math.erf %89 : vector<8x256xf32>
    %cst_39 = arith.constant 1.000000e+00 : f32
    %91 = vector.broadcast %cst_39 : f32 to vector<8x256xf32>
    %92 = arith.addf %91, %90 : vector<8x256xf32>
    %93 = arith.mulf %87, %92 : vector<8x256xf32>
    %c0_40 = arith.constant 0 : index
    %c0_41 = arith.constant 0 : index
    %94 = vector.load %arg5[%c0_40, %c0_41] : memref<256x128xf32, #tpu.memory_space<vmem>>, vector<256x128xf32>
    %cst_42 = arith.constant dense<0.000000e+00> : vector<8x128xf32>
    %95 = tpu.matmul %93, %94, %cst_42 {dimension_numbers = #tpu.dot_dimension_numbers<[1], [0], [0], [1], [0, 0, 1, 1], [], []>} : vector<8x256xf32>, vector<256x128xf32>, vector<8x128xf32> -> vector<8x128xf32>
    %c0_43 = arith.constant 0 : index
    %c1280 = arith.constant 1280 : index
    %96 = vector.load %arg1[%c0_43, %c1280] : memref<1x1792xf32, #tpu.memory_space<vmem>>, vector<1x128xf32>
    %c0_44 = arith.constant 0 : index
    %c1408 = arith.constant 1408 : index
    %97 = vector.load %arg1[%c0_44, %c1408] : memref<1x1792xf32, #tpu.memory_space<vmem>>, vector<1x128xf32>
    %cst_45 = arith.constant dense<0.000000e+00> : vector<128xf32>
    %98 = vector.multi_reduction <add>, %95, %cst_45 [0] : vector<8x128xf32> to vector<128xf32>
    %99 = vector.shape_cast %98 : vector<128xf32> to vector<1x128xf32>
    %cst_46 = arith.constant 8.000000e+00 : f32
    %100 = vector.broadcast %cst_46 : f32 to vector<1x128xf32>
    %101 = arith.divf %99, %100 : vector<1x128xf32>
    %102 = vector.broadcast %101 : vector<1x128xf32> to vector<8x128xf32>
    %103 = arith.subf %95, %102 : vector<8x128xf32>
    %104 = arith.mulf %103, %103 : vector<8x128xf32>
    %cst_47 = arith.constant dense<0.000000e+00> : vector<128xf32>
    %105 = vector.multi_reduction <add>, %104, %cst_47 [0] : vector<8x128xf32> to vector<128xf32>
    %106 = vector.shape_cast %105 : vector<128xf32> to vector<1x128xf32>
    %cst_48 = arith.constant 8.000000e+00 : f32
    %107 = vector.broadcast %cst_48 : f32 to vector<1x128xf32>
    %108 = arith.divf %106, %107 : vector<1x128xf32>
    %cst_49 = arith.constant 9.99999974E-6 : f32
    %109 = vector.broadcast %cst_49 : f32 to vector<1x128xf32>
    %110 = arith.addf %108, %109 : vector<1x128xf32>
    %111 = math.rsqrt %110 : vector<1x128xf32>
    %112 = arith.mulf %96, %111 : vector<1x128xf32>
    %113 = vector.broadcast %112 : vector<1x128xf32> to vector<8x128xf32>
    %114 = arith.mulf %103, %113 : vector<8x128xf32>
    %115 = vector.broadcast %97 : vector<1x128xf32> to vector<8x128xf32>
    %116 = arith.addf %114, %115 : vector<8x128xf32>
    %cst_50 = arith.constant 5.000000e-01 : f32
    %117 = vector.broadcast %cst_50 : f32 to vector<8x128xf32>
    %118 = arith.mulf %117, %116 : vector<8x128xf32>
    %cst_51 = arith.constant 0.707106769 : f32
    %119 = vector.broadcast %cst_51 : f32 to vector<8x128xf32>
    %120 = arith.mulf %116, %119 : vector<8x128xf32>
    %121 = math.erf %120 : vector<8x128xf32>
    %cst_52 = arith.constant 1.000000e+00 : f32
    %122 = vector.broadcast %cst_52 : f32 to vector<8x128xf32>
    %123 = arith.addf %122, %121 : vector<8x128xf32>
    %124 = arith.mulf %118, %123 : vector<8x128xf32>
    %c0_53 = arith.constant 0 : index
    %c0_54 = arith.constant 0 : index
    %125 = vector.load %arg6[%c0_53, %c0_54] : memref<128x32xf32, #tpu.memory_space<vmem>>, vector<128x32xf32>
    %cst_55 = arith.constant dense<0.000000e+00> : vector<8x32xf32>
    %126 = tpu.matmul %124, %125, %cst_55 {dimension_numbers = #tpu.dot_dimension_numbers<[1], [0], [0], [1], [0, 0, 1, 1], [], []>} : vector<8x128xf32>, vector<128x32xf32>, vector<8x32xf32> -> vector<8x32xf32>
    %c0_56 = arith.constant 0 : index
    %c1536 = arith.constant 1536 : index
    %127 = vector.load %arg1[%c0_56, %c1536] : memref<1x1792xf32, #tpu.memory_space<vmem>>, vector<1x32xf32>
    %c0_57 = arith.constant 0 : index
    %c1664 = arith.constant 1664 : index
    %128 = vector.load %arg1[%c0_57, %c1664] : memref<1x1792xf32, #tpu.memory_space<vmem>>, vector<1x32xf32>
    %cst_58 = arith.constant dense<0.000000e+00> : vector<32xf32>
    %129 = vector.multi_reduction <add>, %126, %cst_58 [0] : vector<8x32xf32> to vector<32xf32>
    %130 = vector.shape_cast %129 : vector<32xf32> to vector<1x32xf32>
    %cst_59 = arith.constant 8.000000e+00 : f32
    %131 = vector.broadcast %cst_59 : f32 to vector<1x32xf32>
    %132 = arith.divf %130, %131 : vector<1x32xf32>
    %133 = vector.broadcast %132 : vector<1x32xf32> to vector<8x32xf32>
    %134 = arith.subf %126, %133 : vector<8x32xf32>
    %135 = arith.mulf %134, %134 : vector<8x32xf32>
    %cst_60 = arith.constant dense<0.000000e+00> : vector<32xf32>
    %136 = vector.multi_reduction <add>, %135, %cst_60 [0] : vector<8x32xf32> to vector<32xf32>
    %137 = vector.shape_cast %136 : vector<32xf32> to vector<1x32xf32>
    %cst_61 = arith.constant 8.000000e+00 : f32
    %138 = vector.broadcast %cst_61 : f32 to vector<1x32xf32>
    %139 = arith.divf %137, %138 : vector<1x32xf32>
    %cst_62 = arith.constant 9.99999974E-6 : f32
    %140 = vector.broadcast %cst_62 : f32 to vector<1x32xf32>
    %141 = arith.addf %139, %140 : vector<1x32xf32>
    %142 = math.rsqrt %141 : vector<1x32xf32>
    %143 = arith.mulf %127, %142 : vector<1x32xf32>
    %144 = vector.broadcast %143 : vector<1x32xf32> to vector<8x32xf32>
    %145 = arith.mulf %134, %144 : vector<8x32xf32>
    %146 = vector.broadcast %128 : vector<1x32xf32> to vector<8x32xf32>
    %147 = arith.addf %145, %146 : vector<8x32xf32>
    %cst_63 = arith.constant 5.000000e-01 : f32
    %148 = vector.broadcast %cst_63 : f32 to vector<8x32xf32>
    %149 = arith.mulf %148, %147 : vector<8x32xf32>
    %cst_64 = arith.constant 0.707106769 : f32
    %150 = vector.broadcast %cst_64 : f32 to vector<8x32xf32>
    %151 = arith.mulf %147, %150 : vector<8x32xf32>
    %152 = math.erf %151 : vector<8x32xf32>
    %cst_65 = arith.constant 1.000000e+00 : f32
    %153 = vector.broadcast %cst_65 : f32 to vector<8x32xf32>
    %154 = arith.addf %153, %152 : vector<8x32xf32>
    %155 = arith.mulf %149, %154 : vector<8x32xf32>
    %c0_66 = arith.constant 0 : index
    %c0_67 = arith.constant 0 : index
    %156 = vector.load %arg7[%c0_66, %c0_67] : memref<8x32xf32, #tpu.memory_space<vmem>>, vector<8x32xf32>
    tpu.vector_store %arg7[%c0_66, %c0_67], %155 {strides = array<i32>} : memref<8x32xf32, #tpu.memory_space<vmem>>, vector<8x32xf32>,
    return
  }
}

</mosaic_0001>

<llo_original>
// kernel: tpu_custom_call.1
$region0: #{tpu_custom_call.1}
  #allocation0 [shape = 'u32[]', space=smem, size = 0x4, offset = 0x4, fixed_abs, tag = 'smem constant byte address 0x4 - core index']
  #allocation1 [shape = 'u32[144,128]{1,0:T(1,128)}', space=vmem, size = 0x12000, scoped, tag = 'internal scratch']
  %s0 = inlined_call_operand.vmem [shape: f32[8,64], index: 0, kind: input, shape index: {}]
  %s1 = inlined_call_operand.vmem [shape: f32[1,1792], index: 1, kind: input, shape index: {}]
  %s2 = inlined_call_operand.vmem [shape: f32[64,128], index: 2, kind: input, shape index: {}]
  %s3 = inlined_call_operand.hbm [shape: f32[128,256], index: 3, kind: input, shape index: {}]
  %s4 = inlined_call_operand.hbm [shape: f32[256,256], index: 4, kind: input, shape index: {}]
  %s5 = inlined_call_operand.hbm [shape: f32[256,128], index: 5, kind: input, shape index: {}]
  %s6 = inlined_call_operand.vmem [shape: f32[128,32], index: 6, kind: input, shape index: {}]
  %s7 = inlined_call_operand.hbm [shape: f32[8,32], index: 7, kind: output, shape index: {}]
  %s8 = sld [smem:[#allocation0]]
  $region50: #{tpu_custom_call.1} parent=0
    _
  %s10 = ssub.s32 1, %s8
  %s11 = scalar_select 0, %s10, %s8
  $region1: #{tpu_custom_call.1} parent=0
    #allocation2 [shape = 'u8[131072]{0}', space=vmem, size = 0x20000, scoped, tag = 'input window, operand 3, single buffered']
    #allocation3 [shape = 's32[1]{0}', space=sflag, size = 0x4, scoped, tag = 'scoped memory for tpu_custom_call.1']
    #allocation4 [shape = 's32[1]{0}', space=sflag, size = 0x4, scoped, tag = 'scoped memory for tpu_custom_call.1']
    #allocation5 [shape = 'u8[262144]{0}', space=vmem, size = 0x40000, scoped, tag = 'input window, operand 4, single buffered']
    #allocation6 [shape = 's32[1]{0}', space=sflag, size = 0x4, scoped, tag = 'scoped memory for tpu_custom_call.1']
    #allocation7 [shape = 'u8[131072]{0}', space=vmem, size = 0x20000, scoped, tag = 'input window, operand 5, single buffered']
    #allocation8 [shape = 'u8[4096]{0}', space=vmem, size = 0x1000, scoped, tag = 'output window, operand 0, single buffered']
    %12 = vsyncpa [#allocation3], 0
    %13 = vsyncpa [#allocation6], 0
    %14 = vsyncpa [#allocation4], 0
    // Predicated region
    $region2: #{tpu_custom_call.1} parent=1 // pred_check
      _
    $region3: #{tpu_custom_call.1} parent=1 // pred_check_branch
      %16 = sbr.rel (0) target = $region5
    $region4: #{tpu_custom_call.1} parent=1 // pred_region
      _
    $region5: #{tpu_custom_call.1} parent=1 // pred_fallthru
      _
    // Predicated region
    $region6: #{tpu_custom_call.1} parent=1 // pred_check
      _
    $region7: #{tpu_custom_call.1} parent=1 // pred_check_branch
      %18 = sbr.rel (0) target = $region9
    $region8: #{tpu_custom_call.1} parent=1 // pred_region
      _
    $region9: #{tpu_custom_call.1} parent=1 // pred_fallthru
      _
    // Predicated region
    $region10: #{tpu_custom_call.1} parent=1 // pred_check
      _
    $region11: #{tpu_custom_call.1} parent=1 // pred_check_branch
      %20 = sbr.rel (0) target = $region13
    $region12: #{tpu_custom_call.1} parent=1 // pred_region
      _
    $region13: #{tpu_custom_call.1} parent=1 // pred_fallthru
      _
    // Predicated region
    $region14: #{tpu_custom_call.1} parent=1 // pred_check
      _
    $region15: #{tpu_custom_call.1} parent=1 // pred_check_branch
      %22 = sbr.rel (0) target = $region17
    $region16: #{tpu_custom_call.1} parent=1 // pred_region
      %s24 = ssub.s32 4096, 4096
      %25 = vsyncadd [#allocation3], %s24
      %s26 = sshll.u32 [#allocation2], 4
      %s27 = int_to_ptr.vmem [resolvable:$true] %s26
      %32 = dma.hbm_to_vmem [thread:$0]  %s3, 4096, %s27, [#allocation3], 256, 256, 16
    $region17: #{tpu_custom_call.1} parent=1 // pred_fallthru
      _
    // Predicated region
    $region18: #{tpu_custom_call.1} parent=1 // pred_check
      _
    $region19: #{tpu_custom_call.1} parent=1 // pred_check_branch
      %34 = sbr.rel (0) target = $region21
    $region20: #{tpu_custom_call.1} parent=1 // pred_region
      %s36 = ssub.s32 8192, 8192
      %37 = vsyncadd [#allocation6], %s36
      %s38 = sshll.u32 [#allocation5], 4
      %s39 = int_to_ptr.vmem [resolvable:$true] %s38
      %44 = dma.hbm_to_vmem [thread:$0]  %s4, 8192, %s39, [#allocation6], 256, 256, 16
    $region21: #{tpu_custom_call.1} parent=1 // pred_fallthru
      _
    // Predicated region
    $region22: #{tpu_custom_call.1} parent=1 // pred_check
      _
    $region23: #{tpu_custom_call.1} parent=1 // pred_check_branch
      %46 = sbr.rel (0) target = $region25
    $region24: #{tpu_custom_call.1} parent=1 // pred_region
      %s48 = ssub.s32 4096, 4096
      %49 = vsyncadd [#allocation6], %s48
      %s50 = sshll.u32 [#allocation7], 4
      %s51 = int_to_ptr.vmem [resolvable:$true] %s50
      %56 = dma.hbm_to_vmem [thread:$0]  %s5, 4096, %s51, [#allocation6], 128, 128, 8
    $region25: #{tpu_custom_call.1} parent=1 // pred_fallthru
      _
    // Predicated region
    $region26: #{tpu_custom_call.1} parent=1 // pred_check
      _
    $region27: #{tpu_custom_call.1} parent=1 // pred_check_branch
      %58 = sbr.rel (0) target = $region29
    $region28: #{tpu_custom_call.1} parent=1 // pred_region
      _
    $region29: #{tpu_custom_call.1} parent=1 // pred_fallthru
      _
    // Predicated region
    $region30: #{tpu_custom_call.1} parent=1 // pred_check
      _
    $region31: #{tpu_custom_call.1} parent=1 // pred_check_branch
      %60 = sbr.rel (0) target = $region33
    $region32: #{tpu_custom_call.1} parent=1 // pred_region
      %61 = dma.done [#allocation3], 4096
    $region33: #{tpu_custom_call.1} parent=1 // pred_fallthru
      _
    // Predicated region
    $region34: #{tpu_custom_call.1} parent=1 // pred_check
      _
    $region35: #{tpu_custom_call.1} parent=1 // pred_check_branch
      %63 = sbr.rel (0) target = $region37
    $region36: #{tpu_custom_call.1} parent=1 // pred_region
      %64 = dma.done [#allocation6], 8192
    $region37: #{tpu_custom_call.1} parent=1 // pred_fallthru
      _
    // Predicated region
    $region38: #{tpu_custom_call.1} parent=1 // pred_check
      _
    $region39: #{tpu_custom_call.1} parent=1 // pred_check_branch
      %66 = sbr.rel (0) target = $region41
    $region40: #{tpu_custom_call.1} parent=1 // pred_region
      %67 = dma.done [#allocation6], 4096
    $region41: #{tpu_custom_call.1} parent=1 // pred_fallthru
      _
    %v68 = vld [vmem:[%s0] sm:$0xff]
    %v69 = vld [vmem:[%s2] sm:$0xff]
    %v70 = vld [vmem:[%s2 + $0x8] sm:$0xff]
    %v71 = vld [vmem:[%s2 + $0x10] sm:$0xff]
    %v72 = vld [vmem:[%s2 + $0x18] sm:$0xff]
    %v73 = vld [vmem:[%s2 + $0x20] sm:$0xff]
    %v74 = vld [vmem:[%s2 + $0x28] sm:$0xff]
    %v75 = vld [vmem:[%s2 + $0x30] sm:$0xff]
    %v76 = vld [vmem:[%s2 + $0x38] sm:$0xff]
    %vm77 = vcmask 523264
    %v79 = vsel %vm77, %v68, 0
    %81 = vmatprep.subr.mxu0 0.0
    %82 = vmatpush1.msra.mxu0 0.0
    %83 = vmatprep.subr.mxu0 0.0
    %84 = vmatpush1.msra.mxu0 0.0
    %85 = vmatprep.subr.mxu0 0.0
    %86 = vmatpush1.msra.mxu0 0.0
    %87 = vmatprep.subr.mxu0 0.0
    %88 = vmatpush1.msra.mxu0 0.0
    %89 = vmatprep.subr.mxu0 0.0
    %90 = vmatpush1.msra.mxu0 0.0
    %91 = vmatprep.subr.mxu0 0.0
    %92 = vmatpush1.msra.mxu0 0.0
    %93 = vmatprep.subr.mxu0 0.0
    %94 = vmatpush1.msra.mxu0 0.0
    %95 = vmatprep.subr.mxu0 0.0
    %96 = vmatpush1.msra.mxu0 0.0
    %97 = vmatprep.subr.mxu0 0.0
    %98 = vmatpush1.msra.mxu0 %v76
    %99 = vmatprep.subr.mxu0 0.0
    %100 = vmatpush1.msra.mxu0 %v75
    %101 = vmatprep.subr.mxu0 0.0
    %102 = vmatpush1.msra.mxu0 %v74
    %103 = vmatprep.subr.mxu0 0.0
    %104 = vmatpush1.msra.mxu0 %v73
    %105 = vmatprep.subr.mxu0 0.0
    %106 = vmatpush1.msra.mxu0 %v72
    %107 = vmatprep.subr.mxu0 0.0
    %108 = vmatpush1.msra.mxu0 %v71
    %109 = vmatprep.subr.mxu0 0.0
    %110 = vmatpush1.msra.mxu0 %v70
    %111 = vmatprep.subr.mxu0 0.0
    %112 = vmatpush1.msra.mxu0 %v69
    %113 = vmatprep.subr.mxu0 0.0
    %114 = vmatpush2.msra.mxu0 0.0
    %115 = vmatprep.subr.mxu0 0.0
    %116 = vmatpush2.msra.mxu0 0.0
    %117 = vmatprep.subr.mxu0 0.0
    %118 = vmatpush2.msra.mxu0 0.0
    %119 = vmatprep.subr.mxu0 0.0
    %120 = vmatpush2.msra.mxu0 0.0
    %121 = vmatprep.subr.mxu0 0.0
    %122 = vmatpush2.msra.mxu0 0.0
    %123 = vmatprep.subr.mxu0 0.0
    %124 = vmatpush2.msra.mxu0 0.0
    %125 = vmatprep.subr.mxu0 0.0
    %126 = vmatpush2.msra.mxu0 0.0
    %127 = vmatprep.subr.mxu0 0.0
    %128 = vmatpush2.msra.mxu0 0.0
    %129 = vmatprep.subr.mxu0 0.0
    %130 = vmatpush2.msra.mxu0 0.0
    %131 = vmatprep.subr.mxu0 0.0
    %132 = vmatpush2.msra.mxu0 0.0
    %133 = vmatprep.subr.mxu0 0.0
    %134 = vmatpush2.msra.mxu0 0.0
    %135 = vmatprep.subr.mxu0 0.0
    %136 = vmatpush2.msra.mxu0 0.0
    %137 = vmatprep.subr.mxu0 0.0
    %138 = vmatpush2.msra.mxu0 0.0
    %139 = vmatprep.subr.mxu0 0.0
    %140 = vmatpush2.msra.mxu0 0.0
    %141 = vmatprep.subr.mxu0 0.0
    %142 = vmatpush2.msra.mxu0 0.0
    %143 = vmatprep.subr.mxu0 0.0
    %144 = vmatpush2.msra.mxu0 0.0
    %145 = vmatprep.mubr.f32.mxu0 0.0
    %146 = vmatmul.mubr.f32.gmra.mxu0 %v79
    %v147 = vpop.f32.mrf.mxu0
    %v148 = vadd.f32 0.0, %v147
    %v149 = vpop.f32.mrf.mxu0
    %150 = vdwg.mxu0
    %v151 = vld [vmem:[%s1] sm:$0x1]
    %v152 = vld [vmem:[%s1 + $0x1] sm:$0x1]
    %v153 = vrot.slane %v148, 4
    %v154 = vadd.f32 %v148, %v153
    %v155 = vrot.slane %v154, 2
    %v156 = vadd.f32 %v154, %v155
    %v157 = vrot.slane %v156, 1
    %v158 = vadd.f32 %v156, %v157
    %v159 = vrcp.pop 8.0
    %v160 = vmul.f32 %v158, %v159
    %v161 = vsub.f32 %v148, %v160
    %v162 = vmul.f32 %v161, %v161
    %v163 = vrot.slane %v162, 4
    %v164 = vadd.f32 %v162, %v163
    %v165 = vrot.slane %v164, 2
    %v166 = vadd.f32 %v164, %v165
    %v167 = vrot.slane %v166, 1
    %v168 = vadd.f32 %v166, %v167
    %v169 = vmul.f32 %v168, %v159
    %v170 = vadd.f32 %v169, 1e-05
    %v171 = vrsqrt.pop %v170
    %v172 = vmul.f32 %v151, %v171
    %v174 = vlaneseq
    %v175 = vshrl.u32 %v174, 7
    %v176 = vsub.s32 0, %v175
    %v177 = vrot.slane %v172, %v176
    %v179 = vmul.f32 %v161, %v177
    %v181 = vlaneseq
    %v182 = vshrl.u32 %v181, 7
    %v183 = vsub.s32 0, %v182
    %v184 = vrot.slane %v152, %v183
    %v186 = vadd.f32 %v179, %v184
    %v187 = vmul.f32 %v186, 0.5
    %v188 = vmul.f32 %v186, 0.70710677
    %v189 = verf.f32.pop %v188
    %v190 = vadd.f32 %v189, 1.0
    %v191 = vmul.f32 %v187, %v190
    %v192 = vld [vmem:[#allocation2] sm:$0xff]
    %v193 = vld [vmem:[#allocation2 + $0x8] sm:$0xff]
    %v194 = vld [vmem:[#allocation2 + $0x10] sm:$0xff]
    %v195 = vld [vmem:[#allocation2 + $0x18] sm:$0xff]
    %v196 = vld [vmem:[#allocation2 + $0x20] sm:$0xff]
    %v197 = vld [vmem:[#allocation2 + $0x28] sm:$0xff]
    %v198 = vld [vmem:[#allocation2 + $0x30] sm:$0xff]
    %v199 = vld [vmem:[#allocation2 + $0x38] sm:$0xff]
    %v200 = vld [vmem:[#allocation2 + $0x40] sm:$0xff]
    %v201 = vld [vmem:[#allocation2 + $0x48] sm:$0xff]
    %v202 = vld [vmem:[#allocation2 + $0x50] sm:$0xff]
    %v203 = vld [vmem:[#allocation2 + $0x58] sm:$0xff]
    %v204 = vld [vmem:[#allocation2 + $0x60] sm:$0xff]
    %v205 = vld [vmem:[#allocation2 + $0x68] sm:$0xff]
    %v206 = vld [vmem:[#allocation2 + $0x70] sm:$0xff]
    %v207 = vld [vmem:[#allocation2 + $0x78] sm:$0xff]
    %v208 = vld [vmem:[#allocation2 + $0x80] sm:$0xff]
    %v209 = vld [vmem:[#allocation2 + $0x88] sm:$0xff]
    %v210 = vld [vmem:[#allocation2 + $0x90] sm:$0xff]
    %v211 = vld [vmem:[#allocation2 + $0x98] sm:$0xff]
    %v212 = vld [vmem:[#allocation2 + $0xa0] sm:$0xff]
    %v213 = vld [vmem:[#allocation2 + $0xa8] sm:$0xff]
    %v214 = vld [vmem:[#allocation2 + $0xb0] sm:$0xff]
    %v215 = vld [vmem:[#allocation2 + $0xb8] sm:$0xff]
    %v216 = vld [vmem:[#allocation2 + $0xc0] sm:$0xff]
    %v217 = vld [vmem:[#allocation2 + $0xc8] sm:$0xff]
    %v218 = vld [vmem:[#allocation2 + $0xd0] sm:$0xff]
    %v219 = vld [vmem:[#allocation2 + $0xd8] sm:$0xff]
    %v220 = vld [vmem:[#allocation2 + $0xe0] sm:$0xff]
    %v221 = vld [vmem:[#allocation2 + $0xe8] sm:$0xff]
    %v222 = vld [vmem:[#allocation2 + $0xf0] sm:$0xff]
    %v223 = vld [vmem:[#allocation2 + $0xf8] sm:$0xff]
    %224 = vmatprep.subr.mxu0 %v223
    %225 = vmatpush1.msra.mxu0 %v222
    %226 = vmatprep.subr.mxu0 %v221
    %227 = vmatpush1.msra.mxu0 %v220
    %228 = vmatprep.subr.mxu0 %v219
    %229 = vmatpush1.msra.mxu0 %v218
    %230 = vmatprep.subr.mxu0 %v217
    %231 = vmatpush1.msra.mxu0 %v216
    %232 = vmatprep.subr.mxu0 %v215
    %233 = vmatpush1.msra.mxu0 %v214
    %234 = vmatprep.subr.mxu0 %v213
    %235 = vmatpush1.msra.mxu0 %v212
    %236 = vmatprep.subr.mxu0 %v211
    %237 = vmatpush1.msra.mxu0 %v210
    %238 = vmatprep.subr.mxu0 %v209
    %239 = vmatpush1.msra.mxu0 %v208
    %240 = vmatprep.subr.mxu0 %v207
    %241 = vmatpush1.msra.mxu0 %v206
    %242 = vmatprep.subr.mxu0 %v205
    %243 = vmatpush1.msra.mxu0 %v204
    %244 = vmatprep.subr.mxu0 %v203
    %245 = vmatpush1.msra.mxu0 %v202
    %246 = vmatprep.subr.mxu0 %v201
    %247 = vmatpush1.msra.mxu0 %v200
    %248 = vmatprep.subr.mxu0 %v199
    %249 = vmatpush1.msra.mxu0 %v198
    %250 = vmatprep.subr.mxu0 %v197
    %251 = vmatpush1.msra.mxu0 %v196
    %252 = vmatprep.subr.mxu0 %v195
    %253 = vmatpush1.msra.mxu0 %v194
    %254 = vmatprep.subr.mxu0 %v193
    %255 = vmatpush1.msra.mxu0 %v192
    %256 = vmatprep.subr.mxu0 0.0
    %257 = vmatpush2.msra.mxu0 0.0
    %258 = vmatprep.subr.mxu0 0.0
    %259 = vmatpush2.msra.mxu0 0.0
    %260 = vmatprep.subr.mxu0 0.0
    %261 = vmatpush2.msra.mxu0 0.0
    %262 = vmatprep.subr.mxu0 0.0
    %263 = vmatpush2.msra.mxu0 0.0
    %264 = vmatprep.subr.mxu0 0.0
    %265 = vmatpush2.msra.mxu0 0.0
    %266 = vmatprep.subr.mxu0 0.0
    %267 = vmatpush2.msra.mxu0 0.0
    %268 = vmatprep.subr.mxu0 0.0
    %269 = vmatpush2.msra.mxu0 0.0
    %270 = vmatprep.subr.mxu0 0.0
    %271 = vmatpush2.msra.mxu0 0.0
    %272 = vmatprep.subr.mxu0 0.0
    %273 = vmatpush2.msra.mxu0 0.0
    %274 = vmatprep.subr.mxu0 0.0
    %275 = vmatpush2.msra.mxu0 0.0
    %276 = vmatprep.subr.mxu0 0.0
    %277 = vmatpush2.msra.mxu0 0.0
    %278 = vmatprep.subr.mxu0 0.0
    %279 = vmatpush2.msra.mxu0 0.0
    %280 = vmatprep.subr.mxu0 0.0
    %281 = vmatpush2.msra.mxu0 0.0
    %282 = vmatprep.subr.mxu0 0.0
    %283 = vmatpush2.msra.mxu0 0.0
    %284 = vmatprep.subr.mxu0 0.0
    %285 = vmatpush2.msra.mxu0 0.0
    %286 = vmatprep.subr.mxu0 0.0
    %287 = vmatpush2.msra.mxu0 0.0
    %288 = vmatprep.mubr.f32.mxu0 0.0
    %289 = vmatmul.mubr.f32.gmra.mxu0 %v191
    %v290 = vpop.f32.mrf.mxu0
    %v291 = vadd.f32 0.0, %v290
    %v292 = vpop.f32.mrf.mxu0
    %v293 = vadd.f32 0.0, %v292
    %294 = vdwg.mxu0
    %v295 = vld [vmem:[%s1 + $0x2] sm:$0x3]
    %v296 = vld [vmem:[%s1 + $0x4] sm:$0x3]
    %v297 = vrot.slane %v291, 4
    %v298 = vadd.f32 %v291, %v297
    %v299 = vrot.slane %v298, 2
    %v300 = vadd.f32 %v298, %v299
    %v301 = vrot.slane %v300, 1
    %v302 = vadd.f32 %v300, %v301
    %v303 = vrot.slane %v293, 4
    %v304 = vadd.f32 %v293, %v303
    %v305 = vrot.slane %v304, 2
    %v306 = vadd.f32 %v304, %v305
    %v307 = vrot.slane %v306, 1
    %v308 = vadd.f32 %v306, %v307
    %v309 = vmul.f32 %v302, %v159
    %v310 = vmul.f32 %v308, %v159
    %v311 = vsub.f32 %v291, %v309
    %v312 = vsub.f32 %v293, %v310
    %v313 = vmul.f32 %v311, %v311
    %v314 = vmul.f32 %v312, %v312
    %v315 = vrot.slane %v313, 4
    %v316 = vadd.f32 %v313, %v315
    %v317 = vrot.slane %v316, 2
    %v318 = vadd.f32 %v316, %v317
    %v319 = vrot.slane %v318, 1
    %v320 = vadd.f32 %v318, %v319
    %v321 = vrot.slane %v314, 4
    %v322 = vadd.f32 %v314, %v321
    %v323 = vrot.slane %v322, 2
    %v324 = vadd.f32 %v322, %v323
    %v325 = vrot.slane %v324, 1
    %v326 = vadd.f32 %v324, %v325
    %v327 = vmul.f32 %v320, %v159
    %v328 = vmul.f32 %v326, %v159
    %v329 = vadd.f32 %v327, 1e-05
    %v330 = vadd.f32 %v328, 1e-05
    %v331 = vrsqrt.pop %v329
    %v332 = vrsqrt.pop %v330
    %v335 = vcombine.low %v331, %v332
    %v337 = vunpack.c.l.s4 1966171168
    %v338 = vunpack.c.0.s8 %v337
    %v339 = vlaneseq
    %v340 = vshrl.u32 %v339, 7
    %v341 = vsub.s32 %v338, %v340
    %v342 = vrot.slane %v335, %v341
    %v344 = vunpack.c.l.s4 1966171168
    %v345 = vunpack.c.0.s8 %v344
    %v346 = vlaneseq
    %v347 = vshrl.u32 %v346, 7
    %v348 = vsub.s32 %v345, %v347
    %v349 = vrot.slane %v342, %v348
    %v351 = vmul.f32 %v295, %v349
    %v353 = vlaneseq
    %v354 = vshrl.u32 %v353, 7
    %v355 = vsub.s32 0, %v354
    %v356 = vrot.slane %v351, %v355
    %v357 = vlaneseq
    %v358 = vshrl.u32 %v357, 7
    %v359 = vsub.s32 1, %v358
    %v360 = vrot.slane %v351, %v359
    %v363 = vmul.f32 %v311, %v356
    %v364 = vmul.f32 %v312, %v360
    %v366 = vlaneseq
    %v367 = vshrl.u32 %v366, 7
    %v368 = vsub.s32 0, %v367
    %v369 = vrot.slane %v296, %v368
    %v370 = vlaneseq
    %v371 = vshrl.u32 %v370, 7
    %v372 = vsub.s32 1, %v371
    %v373 = vrot.slane %v296, %v372
    %v376 = vadd.f32 %v363, %v369
    %v377 = vadd.f32 %v364, %v373
    %v378 = vmul.f32 %v376, 0.5
    %v379 = vmul.f32 %v377, 0.5
    %v380 = vmul.f32 %v376, 0.70710677
    %v381 = vmul.f32 %v377, 0.70710677
    %v382 = verf.f32.pop %v380
    %v383 = verf.f32.pop %v381
    %v384 = vadd.f32 %v382, 1.0
    %v385 = vadd.f32 %v383, 1.0
    %v386 = vmul.f32 %v378, %v384
    %v387 = vmul.f32 %v379, %v385
    %v388 = vld [vmem:[#allocation5] sm:$0xff]
    %v389 = vld [vmem:[#allocation5 + $0x8] sm:$0xff]
    %v390 = vld [vmem:[#allocation5 + $0x10] sm:$0xff]
    %v391 = vld [vmem:[#allocation5 + $0x18] sm:$0xff]
    %v392 = vld [vmem:[#allocation5 + $0x20] sm:$0xff]
    %v393 = vld [vmem:[#allocation5 + $0x28] sm:$0xff]
    %v394 = vld [vmem:[#allocation5 + $0x30] sm:$0xff]
    %v395 = vld [vmem:[#allocation5 + $0x38] sm:$0xff]
    %v396 = vld [vmem:[#allocation5 + $0x40] sm:$0xff]
    %v397 = vld [vmem:[#allocation5 + $0x48] sm:$0xff]
    %v398 = vld [vmem:[#allocation5 + $0x50] sm:$0xff]
    %v399 = vld [vmem:[#allocation5 + $0x58] sm:$0xff]
    %v400 = vld [vmem:[#allocation5 + $0x60] sm:$0xff]
    %v401 = vld [vmem:[#allocation5 + $0x68] sm:$0xff]
    %v402 = vld [vmem:[#allocation5 + $0x70] sm:$0xff]
    %v403 = vld [vmem:[#allocation5 + $0x78] sm:$0xff]
    %v404 = vld [vmem:[#allocation5 + $0x80] sm:$0xff]
    %v405 = vld [vmem:[#allocation5 + $0x88] sm:$0xff]
    %v406 = vld [vmem:[#allocation5 + $0x90] sm:$0xff]
    %v407 = vld [vmem:[#allocation5 + $0x98] sm:$0xff]
    %v408 = vld [vmem:[#allocation5 + $0xa0] sm:$0xff]
    %v409 = vld [vmem:[#allocation5 + $0xa8] sm:$0xff]
    %v410 = vld [vmem:[#allocation5 + $0xb0] sm:$0xff]
    %v411 = vld [vmem:[#allocation5 + $0xb8] sm:$0xff]
    %v412 = vld [vmem:[#allocation5 + $0xc0] sm:$0xff]
    %v413 = vld [vmem:[#allocation5 + $0xc8] sm:$0xff]
    %v414 = vld [vmem:[#allocation5 + $0xd0] sm:$0xff]
    %v415 = vld [vmem:[#allocation5 + $0xd8] sm:$0xff]
    %v416 = vld [vmem:[#allocation5 + $0xe0] sm:$0xff]
    %v417 = vld [vmem:[#allocation5 + $0xe8] sm:$0xff]
    %v418 = vld [vmem:[#allocation5 + $0xf0] sm:$0xff]
    %v419 = vld [vmem:[#allocation5 + $0xf8] sm:$0xff]
    %v420 = vld [vmem:[#allocation5 + $0x100] sm:$0xff]
    %v421 = vld [vmem:[#allocation5 + $0x108] sm:$0xff]
    %v422 = vld [vmem:[#allocation5 + $0x110] sm:$0xff]
    %v423 = vld [vmem:[#allocation5 + $0x118] sm:$0xff]
    %v424 = vld [vmem:[#allocation5 + $0x120] sm:$0xff]
    %v425 = vld [vmem:[#allocation5 + $0x128] sm:$0xff]
    %v426 = vld [vmem:[#allocation5 + $0x130] sm:$0xff]
    %v427 = vld [vmem:[#allocation5 + $0x138] sm:$0xff]
    %v428 = vld [vmem:[#allocation5 + $0x140] sm:$0xff]
    %v429 = vld [vmem:[#allocation5 + $0x148] sm:$0xff]
    %v430 = vld [vmem:[#allocation5 + $0x150] sm:$0xff]
    %v431 = vld [vmem:[#allocation5 + $0x158] sm:$0xff]
    %v432 = vld [vmem:[#allocation5 + $0x160] sm:$0xff]
    %v433 = vld [vmem:[#allocation5 + $0x168] sm:$0xff]
    %v434 = vld [vmem:[#allocation5 + $0x170] sm:$0xff]
    %v435 = vld [vmem:[#allocation5 + $0x178] sm:$0xff]
    %v436 = vld [vmem:[#allocation5 + $0x180] sm:$0xff]
    %v437 = vld [vmem:[#allocation5 + $0x188] sm:$0xff]
    %v438 = vld [vmem:[#allocation5 + $0x190] sm:$0xff]
    %v439 = vld [vmem:[#allocation5 + $0x198] sm:$0xff]
    %v440 = vld [vmem:[#allocation5 + $0x1a0] sm:$0xff]
    %v441 = vld [vmem:[#allocation5 + $0x1a8] sm:$0xff]
    %v442 = vld [vmem:[#allocation5 + $0x1b0] sm:$0xff]
    %v443 = vld [vmem:[#allocation5 + $0x1b8] sm:$0xff]
    %v444 = vld [vmem:[#allocation5 + $0x1c0] sm:$0xff]
    %v445 = vld [vmem:[#allocation5 + $0x1c8] sm:$0xff]
    %v446 = vld [vmem:[#allocation5 + $0x1d0] sm:$0xff]
    %v447 = vld [vmem:[#allocation5 + $0x1d8] sm:$0xff]
    %v448 = vld [vmem:[#allocation5 + $0x1e0] sm:$0xff]
    %v449 = vld [vmem:[#allocation5 + $0x1e8] sm:$0xff]
    %v450 = vld [vmem:[#allocation5 + $0x1f0] sm:$0xff]
    %v451 = vld [vmem:[#allocation5 + $0x1f8] sm:$0xff]
    %452 = vmatprep.subr.mxu0 %v419
    %453 = vmatpush1.msra.mxu0 %v418
    %454 = vmatprep.subr.mxu0 %v417
    %455 = vmatpush1.msra.mxu0 %v416
    %456 = vmatprep.subr.mxu0 %v415
    %457 = vmatpush1.msra.mxu0 %v414
    %458 = vmatprep.subr.mxu0 %v413
    %459 = vmatpush1.msra.mxu0 %v412
    %460 = vmatprep.subr.mxu0 %v411
    %461 = vmatpush1.msra.mxu0 %v410
    %462 = vmatprep.subr.mxu0 %v409
    %463 = vmatpush1.msra.mxu0 %v408
    %464 = vmatprep.subr.mxu0 %v407
    %465 = vmatpush1.msra.mxu0 %v406
    %466 = vmatprep.subr.mxu0 %v405
    %467 = vmatpush1.msra.mxu0 %v404
    %468 = vmatprep.subr.mxu0 %v403
    %469 = vmatpush1.msra.mxu0 %v402
    %470 = vmatprep.subr.mxu0 %v401
    %471 = vmatpush1.msra.mxu0 %v400
    %472 = vmatprep.subr.mxu0 %v399
    %473 = vmatpush1.msra.mxu0 %v398
    %474 = vmatprep.subr.mxu0 %v397
    %475 = vmatpush1.msra.mxu0 %v396
    %476 = vmatprep.subr.mxu0 %v395
    %477 = vmatpush1.msra.mxu0 %v394
    %478 = vmatprep.subr.mxu0 %v393
    %479 = vmatpush1.msra.mxu0 %v392
    %480 = vmatprep.subr.mxu0 %v391
    %481 = vmatpush1.msra.mxu0 %v390
    %482 = vmatprep.subr.mxu0 %v389
    %483 = vmatpush1.msra.mxu0 %v388
    %484 = vmatprep.subr.mxu0 %v451
    %485 = vmatpush2.msra.mxu0 %v450
    %486 = vmatprep.subr.mxu0 %v449
    %487 = vmatpush2.msra.mxu0 %v448
    %488 = vmatprep.subr.mxu0 %v447
    %489 = vmatpush2.msra.mxu0 %v446
    %490 = vmatprep.subr.mxu0 %v445
    %491 = vmatpush2.msra.mxu0 %v444
    %492 = vmatprep.subr.mxu0 %v443
    %493 = vmatpush2.msra.mxu0 %v442
    %494 = vmatprep.subr.mxu0 %v441
    %495 = vmatpush2.msra.mxu0 %v440
    %496 = vmatprep.subr.mxu0 %v439
    %497 = vmatpush2.msra.mxu0 %v438
    %498 = vmatprep.subr.mxu0 %v437
    %499 = vmatpush2.msra.mxu0 %v436
    %500 = vmatprep.subr.mxu0 %v435
    %501 = vmatpush2.msra.mxu0 %v434
    %502 = vmatprep.subr.mxu0 %v433
    %503 = vmatpush2.msra.mxu0 %v432
    %504 = vmatprep.subr.mxu0 %v431
    %505 = vmatpush2.msra.mxu0 %v430
    %506 = vmatprep.subr.mxu0 %v429
    %507 = vmatpush2.msra.mxu0 %v428
    %508 = vmatprep.subr.mxu0 %v427
    %509 = vmatpush2.msra.mxu0 %v426
    %510 = vmatprep.subr.mxu0 %v425
    %511 = vmatpush2.msra.mxu0 %v424
    %512 = vmatprep.subr.mxu0 %v423
    %513 = vmatpush2.msra.mxu0 %v422
    %514 = vmatprep.subr.mxu0 %v421
    %515 = vmatpush2.msra.mxu0 %v420
    %516 = vmatprep.mubr.f32.mxu0 %v387
    %517 = vmatmul.mubr.f32.gmra.mxu0 %v386
    %v518 = vpop.f32.mrf.mxu0
    %v519 = vadd.f32 0.0, %v518
    %v520 = vpop.f32.mrf.mxu0
    %v521 = vadd.f32 0.0, %v520
    %522 = vdwg.mxu0
    %v523 = vld [vmem:[%s1 + $0x6] sm:$0x3]
    %v524 = vld [vmem:[%s1 + $0x8] sm:$0x3]
    %v525 = vrot.slane %v519, 4
    %v526 = vadd.f32 %v519, %v525
    %v527 = vrot.slane %v526, 2
    %v528 = vadd.f32 %v526, %v527
    %v529 = vrot.slane %v528, 1
    %v530 = vadd.f32 %v528, %v529
    %v531 = vrot.slane %v521, 4
    %v532 = vadd.f32 %v521, %v531
    %v533 = vrot.slane %v532, 2
    %v534 = vadd.f32 %v532, %v533
    %v535 = vrot.slane %v534, 1
    %v536 = vadd.f32 %v534, %v535
    %v537 = vmul.f32 %v530, %v159
    %v538 = vmul.f32 %v536, %v159
    %v539 = vsub.f32 %v519, %v537
    %v540 = vsub.f32 %v521, %v538
    %v541 = vmul.f32 %v539, %v539
    %v542 = vmul.f32 %v540, %v540
    %v543 = vrot.slane %v541, 4
    %v544 = vadd.f32 %v541, %v543
    %v545 = vrot.slane %v544, 2
    %v546 = vadd.f32 %v544, %v545
    %v547 = vrot.slane %v546, 1
    %v548 = vadd.f32 %v546, %v547
    %v549 = vrot.slane %v542, 4
    %v550 = vadd.f32 %v542, %v549
    %v551 = vrot.slane %v550, 2
    %v552 = vadd.f32 %v550, %v551
    %v553 = vrot.slane %v552, 1
    %v554 = vadd.f32 %v552, %v553
    %v555 = vmul.f32 %v548, %v159
    %v556 = vmul.f32 %v554, %v159
    %v557 = vadd.f32 %v555, 1e-05
    %v558 = vadd.f32 %v556, 1e-05
    %v559 = vrsqrt.pop %v557
    %v560 = vrsqrt.pop %v558
    %v563 = vcombine.low %v559, %v560
    %v565 = vunpack.c.l.s4 1966171168
    %v566 = vunpack.c.0.s8 %v565
    %v567 = vlaneseq
    %v568 = vshrl.u32 %v567, 7
    %v569 = vsub.s32 %v566, %v568
    %v570 = vrot.slane %v563, %v569
    %v572 = vunpack.c.l.s4 1966171168
    %v573 = vunpack.c.0.s8 %v572
    %v574 = vlaneseq
    %v575 = vshrl.u32 %v574, 7
    %v576 = vsub.s32 %v573, %v575
    %v577 = vrot.slane %v570, %v576
    %v579 = vmul.f32 %v523, %v577
    %v581 = vlaneseq
    %v582 = vshrl.u32 %v581, 7
    %v583 = vsub.s32 0, %v582
    %v584 = vrot.slane %v579, %v583
    %v585 = vlaneseq
    %v586 = vshrl.u32 %v585, 7
    %v587 = vsub.s32 1, %v586
    %v588 = vrot.slane %v579, %v587
    %v591 = vmul.f32 %v539, %v584
    %v592 = vmul.f32 %v540, %v588
    %v594 = vlaneseq
    %v595 = vshrl.u32 %v594, 7
    %v596 = vsub.s32 0, %v595
    %v597 = vrot.slane %v524, %v596
    %v598 = vlaneseq
    %v599 = vshrl.u32 %v598, 7
    %v600 = vsub.s32 1, %v599
    %v601 = vrot.slane %v524, %v600
    %v604 = vadd.f32 %v591, %v597
    %v605 = vadd.f32 %v592, %v601
    %v606 = vmul.f32 %v604, 0.5
    %v607 = vmul.f32 %v605, 0.5
    %v608 = vmul.f32 %v604, 0.70710677
    %v609 = vmul.f32 %v605, 0.70710677
    %v610 = verf.f32.pop %v608
    %v611 = verf.f32.pop %v609
    %v612 = vadd.f32 %v610, 1.0
    %v613 = vadd.f32 %v611, 1.0
    %v614 = vmul.f32 %v606, %v612
    %v615 = vmul.f32 %v607, %v613
    %v616 = vld [vmem:[#allocation7] sm:$0xff]
    %v617 = vld [vmem:[#allocation7 + $0x8] sm:$0xff]
    %v618 = vld [vmem:[#allocation7 + $0x10] sm:$0xff]
    %v619 = vld [vmem:[#allocation7 + $0x18] sm:$0xff]
    %v620 = vld [vmem:[#allocation7 + $0x20] sm:$0xff]
    %v621 = vld [vmem:[#allocation7 + $0x28] sm:$0xff]
    %v622 = vld [vmem:[#allocation7 + $0x30] sm:$0xff]
    %v623 = vld [vmem:[#allocation7 + $0x38] sm:$0xff]
    %v624 = vld [vmem:[#allocation7 + $0x40] sm:$0xff]
    %v625 = vld [vmem:[#allocation7 + $0x48] sm:$0xff]
    %v626 = vld [vmem:[#allocation7 + $0x50] sm:$0xff]
    %v627 = vld [vmem:[#allocation7 + $0x58] sm:$0xff]
    %v628 = vld [vmem:[#allocation7 + $0x60] sm:$0xff]
    %v629 = vld [vmem:[#allocation7 + $0x68] sm:$0xff]
    %v630 = vld [vmem:[#allocation7 + $0x70] sm:$0xff]
    %v631 = vld [vmem:[#allocation7 + $0x78] sm:$0xff]
    %v632 = vld [vmem:[#allocation7 + $0x80] sm:$0xff]
    %v633 = vld [vmem:[#allocation7 + $0x88] sm:$0xff]
    %v634 = vld [vmem:[#allocation7 + $0x90] sm:$0xff]
    %v635 = vld [vmem:[#allocation7 + $0x98] sm:$0xff]
    %v636 = vld [vmem:[#allocation7 + $0xa0] sm:$0xff]
    %v637 = vld [vmem:[#allocation7 + $0xa8] sm:$0xff]
    %v638 = vld [vmem:[#allocation7 + $0xb0] sm:$0xff]
    %v639 = vld [vmem:[#allocation7 + $0xb8] sm:$0xff]
    %v640 = vld [vmem:[#allocation7 + $0xc0] sm:$0xff]
    %v641 = vld [vmem:[#allocation7 + $0xc8] sm:$0xff]
    %v642 = vld [vmem:[#allocation7 + $0xd0] sm:$0xff]
    %v643 = vld [vmem:[#allocation7 + $0xd8] sm:$0xff]
    %v644 = vld [vmem:[#allocation7 + $0xe0] sm:$0xff]
    %v645 = vld [vmem:[#allocation7 + $0xe8] sm:$0xff]
    %v646 = vld [vmem:[#allocation7 + $0xf0] sm:$0xff]
    %v647 = vld [vmem:[#allocation7 + $0xf8] sm:$0xff]
    %648 = vmatprep.subr.mxu0 0.0
    %649 = vmatpush1.msra.mxu0 %v631
    %650 = vmatprep.subr.mxu0 0.0
    %651 = vmatpush1.msra.mxu0 %v630
    %652 = vmatprep.subr.mxu0 0.0
    %653 = vmatpush1.msra.mxu0 %v629
    %654 = vmatprep.subr.mxu0 0.0
    %655 = vmatpush1.msra.mxu0 %v628
    %656 = vmatprep.subr.mxu0 0.0
    %657 = vmatpush1.msra.mxu0 %v627
    %658 = vmatprep.subr.mxu0 0.0
    %659 = vmatpush1.msra.mxu0 %v626
    %660 = vmatprep.subr.mxu0 0.0
    %661 = vmatpush1.msra.mxu0 %v625
    %662 = vmatprep.subr.mxu0 0.0
    %663 = vmatpush1.msra.mxu0 %v624
    %664 = vmatprep.subr.mxu0 0.0
    %665 = vmatpush1.msra.mxu0 %v623
    %666 = vmatprep.subr.mxu0 0.0
    %667 = vmatpush1.msra.mxu0 %v622
    %668 = vmatprep.subr.mxu0 0.0
    %669 = vmatpush1.msra.mxu0 %v621
    %670 = vmatprep.subr.mxu0 0.0
    %671 = vmatpush1.msra.mxu0 %v620
    %672 = vmatprep.subr.mxu0 0.0
    %673 = vmatpush1.msra.mxu0 %v619
    %674 = vmatprep.subr.mxu0 0.0
    %675 = vmatpush1.msra.mxu0 %v618
    %676 = vmatprep.subr.mxu0 0.0
    %677 = vmatpush1.msra.mxu0 %v617
    %678 = vmatprep.subr.mxu0 0.0
    %679 = vmatpush1.msra.mxu0 %v616
    %680 = vmatprep.subr.mxu0 0.0
    %681 = vmatpush2.msra.mxu0 %v647
    %682 = vmatprep.subr.mxu0 0.0
    %683 = vmatpush2.msra.mxu0 %v646
    %684 = vmatprep.subr.mxu0 0.0
    %685 = vmatpush2.msra.mxu0 %v645
    %686 = vmatprep.subr.mxu0 0.0
    %687 = vmatpush2.msra.mxu0 %v644
    %688 = vmatprep.subr.mxu0 0.0
    %689 = vmatpush2.msra.mxu0 %v643
    %690 = vmatprep.subr.mxu0 0.0
    %691 = vmatpush2.msra.mxu0 %v642
    %692 = vmatprep.subr.mxu0 0.0
    %693 = vmatpush2.msra.mxu0 %v641
    %694 = vmatprep.subr.mxu0 0.0
    %695 = vmatpush2.msra.mxu0 %v640
    %696 = vmatprep.subr.mxu0 0.0
    %697 = vmatpush2.msra.mxu0 %v639
    %698 = vmatprep.subr.mxu0 0.0
    %699 = vmatpush2.msra.mxu0 %v638
    %700 = vmatprep.subr.mxu0 0.0
    %701 = vmatpush2.msra.mxu0 %v637
    %702 = vmatprep.subr.mxu0 0.0
    %703 = vmatpush2.msra.mxu0 %v636
    %704 = vmatprep.subr.mxu0 0.0
    %705 = vmatpush2.msra.mxu0 %v635
    %706 = vmatprep.subr.mxu0 0.0
    %707 = vmatpush2.msra.mxu0 %v634
    %708 = vmatprep.subr.mxu0 0.0
    %709 = vmatpush2.msra.mxu0 %v633
    %710 = vmatprep.subr.mxu0 0.0
    %711 = vmatpush2.msra.mxu0 %v632
    %712 = vmatprep.mubr.f32.mxu0 %v615
    %713 = vmatmul.mubr.f32.gmra.mxu0 %v614
    %v714 = vpop.f32.mrf.mxu0
    %v715 = vadd.f32 0.0, %v714
    %v716 = vpop.f32.mrf.mxu0
    %717 = vdwg.mxu0
    %v718 = vld [vmem:[%s1 + $0xa] sm:$0x1]
    %v719 = vld [vmem:[%s1 + $0xb] sm:$0x1]
    %v720 = vrot.slane %v715, 4
    %v721 = vadd.f32 %v715, %v720
    %v722 = vrot.slane %v721, 2
    %v723 = vadd.f32 %v721, %v722
    %v724 = vrot.slane %v723, 1
    %v725 = vadd.f32 %v723, %v724
    %v726 = vmul.f32 %v725, %v159
    %v727 = vsub.f32 %v715, %v726
    %v728 = vmul.f32 %v727, %v727
    %v729 = vrot.slane %v728, 4
    %v730 = vadd.f32 %v728, %v729
    %v731 = vrot.slane %v730, 2
    %v732 = vadd.f32 %v730, %v731
    %v733 = vrot.slane %v732, 1
    %v734 = vadd.f32 %v732, %v733
    %v735 = vmul.f32 %v734, %v159
    %v736 = vadd.f32 %v735, 1e-05
    %v737 = vrsqrt.pop %v736
    %v738 = vmul.f32 %v718, %v737
    %v740 = vlaneseq
    %v741 = vshrl.u32 %v740, 7
    %v742 = vsub.s32 0, %v741
    %v743 = vrot.slane %v738, %v742
    %v745 = vmul.f32 %v727, %v743
    %v747 = vlaneseq
    %v748 = vshrl.u32 %v747, 7
    %v749 = vsub.s32 0, %v748
    %v750 = vrot.slane %v719, %v749
    %v752 = vadd.f32 %v745, %v750
    %v753 = vmul.f32 %v752, 0.5
    %v754 = vmul.f32 %v752, 0.70710677
    %v755 = verf.f32.pop %v754
    %v756 = vadd.f32 %v755, 1.0
    %v757 = vmul.f32 %v753, %v756
    %v758 = vld [vmem:[%s6] sm:$0xff]
    %v759 = vld [vmem:[%s6 + $0x8] sm:$0xff]
    %v760 = vld [vmem:[%s6 + $0x10] sm:$0xff]
    %v761 = vld [vmem:[%s6 + $0x18] sm:$0xff]
    %v762 = vld [vmem:[%s6 + $0x20] sm:$0xff]
    %v763 = vld [vmem:[%s6 + $0x28] sm:$0xff]
    %v764 = vld [vmem:[%s6 + $0x30] sm:$0xff]
    %v765 = vld [vmem:[%s6 + $0x38] sm:$0xff]
    %v766 = vld [vmem:[%s6 + $0x40] sm:$0xff]
    %v767 = vld [vmem:[%s6 + $0x48] sm:$0xff]
    %v768 = vld [vmem:[%s6 + $0x50] sm:$0xff]
    %v769 = vld [vmem:[%s6 + $0x58] sm:$0xff]
    %v770 = vld [vmem:[%s6 + $0x60] sm:$0xff]
    %v771 = vld [vmem:[%s6 + $0x68] sm:$0xff]
    %v772 = vld [vmem:[%s6 + $0x70] sm:$0xff]
    %v773 = vld [vmem:[%s6 + $0x78] sm:$0xff]
    %774 = vmatprep.subr.mxu0 0.0
    %775 = vmatpush1.msra.mxu0 %v773
    %776 = vmatprep.subr.mxu0 0.0
    %777 = vmatpush1.msra.mxu0 %v772
    %778 = vmatprep.subr.mxu0 0.0
    %779 = vmatpush1.msra.mxu0 %v771
    %780 = vmatprep.subr.mxu0 0.0
    %781 = vmatpush1.msra.mxu0 %v770
    %782 = vmatprep.subr.mxu0 0.0
    %783 = vmatpush1.msra.mxu0 %v769
    %784 = vmatprep.subr.mxu0 0.0
    %785 = vmatpush1.msra.mxu0 %v768
    %786 = vmatprep.subr.mxu0 0.0
    %787 = vmatpush1.msra.mxu0 %v767
    %788 = vmatprep.subr.mxu0 0.0
    %789 = vmatpush1.msra.mxu0 %v766
    %790 = vmatprep.subr.mxu0 0.0
    %791 = vmatpush1.msra.mxu0 %v765
    %792 = vmatprep.subr.mxu0 0.0
    %793 = vmatpush1.msra.mxu0 %v764
    %794 = vmatprep.subr.mxu0 0.0
    %795 = vmatpush1.msra.mxu0 %v763
    %796 = vmatprep.subr.mxu0 0.0
    %797 = vmatpush1.msra.mxu0 %v762
    %798 = vmatprep.subr.mxu0 0.0
    %799 = vmatpush1.msra.mxu0 %v761
    %800 = vmatprep.subr.mxu0 0.0
    %801 = vmatpush1.msra.mxu0 %v760
    %802 = vmatprep.subr.mxu0 0.0
    %803 = vmatpush1.msra.mxu0 %v759
    %804 = vmatprep.subr.mxu0 0.0
    %805 = vmatpush1.msra.mxu0 %v758
    %806 = vmatprep.subr.mxu0 0.0
    %807 = vmatpush2.msra.mxu0 0.0
    %808 = vmatprep.subr.mxu0 0.0
    %809 = vmatpush2.msra.mxu0 0.0
    %810 = vmatprep.subr.mxu0 0.0
    %811 = vmatpush2.msra.mxu0 0.0
    %812 = vmatprep.subr.mxu0 0.0
    %813 = vmatpush2.msra.mxu0 0.0
    %814 = vmatprep.subr.mxu0 0.0
    %815 = vmatpush2.msra.mxu0 0.0
    %816 = vmatprep.subr.mxu0 0.0
    %817 = vmatpush2.msra.mxu0 0.0
    %818 = vmatprep.subr.mxu0 0.0
    %819 = vmatpush2.msra.mxu0 0.0
    %820 = vmatprep.subr.mxu0 0.0
    %821 = vmatpush2.msra.mxu0 0.0
    %822 = vmatprep.subr.mxu0 0.0
    %823 = vmatpush2.msra.mxu0 0.0
    %824 = vmatprep.subr.mxu0 0.0
    %825 = vmatpush2.msra.mxu0 0.0
    %826 = vmatprep.subr.mxu0 0.0
    %827 = vmatpush2.msra.mxu0 0.0
    %828 = vmatprep.subr.mxu0 0.0
    %829 = vmatpush2.msra.mxu0 0.0
    %830 = vmatprep.subr.mxu0 0.0
    %831 = vmatpush2.msra.mxu0 0.0
    %832 = vmatprep.subr.mxu0 0.0
    %833 = vmatpush2.msra.mxu0 0.0
    %834 = vmatprep.subr.mxu0 0.0
    %835 = vmatpush2.msra.mxu0 0.0
    %836 = vmatprep.subr.mxu0 0.0
    %837 = vmatpush2.msra.mxu0 0.0
    %838 = vmatprep.mubr.f32.mxu0 0.0
    %839 = vmatmul.mubr.f32.gmra.mxu0 %v757
    %v840 = vpop.f32.mrf.mxu0
    %v841 = vadd.f32 0.0, %v840
    %v842 = vpop.f32.mrf.mxu0
    %843 = vdwg.mxu0
    %v844 = vld [vmem:[%s1 + $0xc] sm:$0x1]
    %v845 = vld [vmem:[%s1 + $0xd] sm:$0x1]
    %vm846 = vcmask 261120
    %v847 = vsel %vm846, %v841, 0.0
    %v848 = vrot.slane %v847, 4
    %v849 = vadd.f32 %v847, %v848
    %v850 = vrot.slane %v849, 2
    %v851 = vadd.f32 %v849, %v850
    %v852 = vrot.slane %v851, 1
    %v853 = vadd.f32 %v851, %v852
    %v854 = vmul.f32 %v853, %v159
    %v855 = vsub.f32 %v841, %v854
    %v856 = vmul.f32 %v855, %v855
    %v857 = vsel %vm846, %v856, 0.0
    %v858 = vrot.slane %v857, 4
    %v859 = vadd.f32 %v857, %v858
    %v860 = vrot.slane %v859, 2
    %v861 = vadd.f32 %v859, %v860
    %v862 = vrot.slane %v861, 1
    %v863 = vadd.f32 %v861, %v862
    %v864 = vmul.f32 %v863, %v159
    %v865 = vadd.f32 %v864, 1e-05
    %v866 = vrsqrt.pop %v865
    %v867 = vmul.f32 %v844, %v866
    %v869 = vlaneseq
    %v870 = vshrl.u32 %v869, 7
    %v871 = vsub.s32 0, %v870
    %v872 = vrot.slane %v867, %v871
    %v874 = vmul.f32 %v855, %v872
    %v876 = vlaneseq
    %v877 = vshrl.u32 %v876, 7
    %v878 = vsub.s32 0, %v877
    %v879 = vrot.slane %v845, %v878
    %v881 = vadd.f32 %v874, %v879
    %v882 = vmul.f32 %v881, 0.5
    %v883 = vmul.f32 %v881, 0.70710677
    %v884 = verf.f32.pop %v883
    %v885 = vadd.f32 %v884, 1.0
    %v886 = vmul.f32 %v882, %v885
    %887 = vst.msk [vmem:[#allocation8] sm:$0xff] %vm846, %v886
    // Predicated region
    $region42: #{tpu_custom_call.1} parent=1 // pred_check
      _
    $region43: #{tpu_custom_call.1} parent=1 // pred_check_branch
      %889 = sbr.rel (0) target = $region45
    $region44: #{tpu_custom_call.1} parent=1 // pred_region
      %s891 = ssub.s32 128, 128
      %892 = vsyncadd [#allocation4], %s891
      %s894 = sshll.u32 [#allocation8], 4
      %s895 = int_to_ptr.vmem [resolvable:$true] %s894
      %897 = dma.vmem_to_hbm [thread:$0]  %s895, 128, %s7, [#allocation4]
    $region45: #{tpu_custom_call.1} parent=1 // pred_fallthru
      _
    // Predicated region
    $region46: #{tpu_custom_call.1} parent=1 // pred_check
      _
    $region47: #{tpu_custom_call.1} parent=1 // pred_check_branch
      %899 = sbr.rel (0) target = $region49
    $region48: #{tpu_custom_call.1} parent=1 // pred_region
      %900 = dma.done [#allocation4], 128
    $region49: #{tpu_custom_call.1} parent=1 // pred_fallthru
      _
    %901 = vsyncpa [#allocation3], 1
    %902 = vsyncpa [#allocation6], 1
    %903 = vsyncpa [#allocation4], 1

</llo_original>
